<compile_context>
chip_gen: v5e
topology: v5e:2x2
jax: 0.10.0
libtpu: 0.0.40
codegen_flags: <defaults>
</compile_context>

<pallas_src>
import jax
import jax.numpy as jnp
from jax.experimental import pallas as pl
from jax.experimental.pallas import tpu as pltpu

ZERO_CLIP = 1e-6


def membership_kernel(x_ref, c_ref, lam_ref, hlam_ref, ilam_ref, o_ref):
    # x_ref:    (TB, D, TW)   batch block of inputs (WH tile on lanes)
    # c_ref:    (D, C, 1)     centers            (C on sublanes)
    # lam_ref:  (D, C, 1)     widths
    # hlam_ref: (D, C, 1)     0.5 * widths
    # ilam_ref: (D, C, 1)     where(lam > 0, 1/lam, 0)
    # o_ref:    (TB, C, TW)
    TB, D, TW = x_ref.shape

    for b in range(TB):
        acc = None
        for d in range(D):
            x_d = x_ref[b, d:d + 1, :]                 # (1, TW)
            c_d = c_ref[d]                             # (C, 1)
            lam_d = lam_ref[d]
            hlam_d = hlam_ref[d]
            ilam_d = ilam_ref[d]

            diff = jnp.abs(x_d - c_d)                  # (C, TW)
            ratio = diff * ilam_d                      # VPU mul, no divide
            one_m_r = 1.0 - ratio
            val_r1 = 2.0 * one_m_r * one_m_r           # lam/2 <= diff < lam
            val_r2 = 1.0 - 2.0 * ratio * ratio         # 0 <= diff < lam/2
            # regions are disjoint; lam <= 0 makes both conditions false.
            val = jnp.where(diff < hlam_d, val_r2,
                            jnp.where(diff < lam_d, val_r1, 0.0))
            # clamp(min=eps)+clamp(max=-eps) == max(val, eps) - eps (val >= 0)
            m = jnp.maximum(val, ZERO_CLIP) - ZERO_CLIP
            acc = m if acc is None else acc * m

        o_ref[b, :, :] = jnp.maximum(acc, ZERO_CLIP)   # (C, TW)


def _pick_tile(total, candidates):
    for cand in candidates:
        if cand <= total and total % cand == 0:
            return cand
    return total


def membership_activation(x, c, lam):
    N, D, WH = x.shape
    Dc, C = c.shape
    assert D == Dc and lam.shape == (D, C)

    x = x.astype(jnp.float32)
    c = c.astype(jnp.float32)
    lam = lam.astype(jnp.float32)

    # Host-side (D, C)-sized precompute: safe reciprocal / half width.
    # TODO(synk): for lam <= 0 the PyTorch module emits NaN (0 * inf); here the
    # membership value is 0 (output then clamps to 1e-6), which matches the
    # intended semantics for every valid (lam > 0) parameter.
    safe_lam = jnp.where(lam > 0.0, lam, 1.0)
    inv_lam = jnp.where(lam > 0.0, 1.0 / safe_lam, 0.0)
    half_lam = 0.5 * lam

    c3 = c[:, :, None]          # (D, C, 1): C on sublanes, lane broadcast free
    lam3 = lam[:, :, None]
    hlam3 = half_lam[:, :, None]
    ilam3 = inv_lam[:, :, None]

    # Lane-dense WH tile (multiple of 128 when possible) + a batch block so
    # per-grid-step work amortizes the ~0.35us step overhead.
    TW = _pick_tile(WH, (1024, 512, 256, 128))
    TB = _pick_tile(N, (16, 8, 4, 2, 1))
    grid = (N // TB, WH // TW)

    # Explicit VMEM budget: double-buffered x/out tiles + params + working
    # set, with headroom; capped at 32 MiB (within v7x's 64 MiB physical).
    elt = 4
    io_bytes = 2 * (TB * D * TW + TB * C * TW) * elt
    par_bytes = 2 * 4 * D * C * elt
    work_bytes = 8 * C * TW * elt
    vmem_limit = int(min(max(4 * (io_bytes + par_bytes + work_bytes),
                             16 * 1024 * 1024),
                         32 * 1024 * 1024))

    param_spec = pl.BlockSpec((D, C, 1), lambda n, w: (0, 0, 0))
    return pl.pallas_call(
        membership_kernel,
        out_shape=jax.ShapeDtypeStruct((N, C, WH), jnp.float32),
        grid_spec=pltpu.PrefetchScalarGridSpec(
            num_scalar_prefetch=0,
            grid=grid,
            in_specs=[
                pl.BlockSpec((TB, D, TW), lambda n, w: (n, 0, w)),
                param_spec, param_spec, param_spec, param_spec,
            ],
            out_specs=pl.BlockSpec((TB, C, TW), lambda n, w: (n, 0, w)),
        ),
        compiler_params=pltpu.CompilerParams(
            dimension_semantics=("parallel", "parallel"),
            vmem_limit_bytes=vmem_limit),
    )(x, c3, lam3, hlam3, ilam3)


def membership_ref(x, c, lam):
    """Pure-JAX reference mirroring the PyTorch forward (lam > 0 case)."""
    xe = x[:, :, None, :]                          # (N, D, 1, WH)
    ce = c[None, :, :, None]                       # (1, D, C, 1)
    le = lam[None, :, :, None]
    diff = jnp.abs(xe - ce)
    le_safe = jnp.where(le > 0.0, le, 1.0)
    valid = (le > 0.0).astype(jnp.float32)
    r1 = ((diff >= le / 2) & (diff < le)).astype(jnp.float32)
    r2 = ((diff >= 0.0) & (diff < le / 2)).astype(jnp.float32)
    o1 = valid * r1 * 2.0 * (1.0 - diff / le_safe) ** 2
    o2 = valid * r2 * (1.0 - 2.0 * (diff / le_safe) ** 2)
    c1 = jnp.maximum(o1, ZERO_CLIP) + jnp.minimum(o1, -ZERO_CLIP)
    c2 = jnp.maximum(o2, ZERO_CLIP) + jnp.minimum(o2, -ZERO_CLIP)
    return jnp.maximum(jnp.prod(c1 + c2, axis=1), ZERO_CLIP)


if __name__ == "__main__":
    # Small shapes consistent with the module: N batch, D feature, C classes,
    # WH flattened spatial (128 for lane alignment).
    N, D, C, WH = 2, 4, 8, 128

    key = jax.random.PRNGKey(0)
    kx, kc, kl = jax.random.split(key, 3)
    x = 0.5 * jax.random.normal(kx, (N, D, WH), dtype=jnp.float32)
    # Module default is c=0, lamda=1; perturb slightly so every region is
    # exercised while keeping lamda > 0.
    c_param = 0.1 * jax.random.normal(kc, (D, C), dtype=jnp.float32)
    lam_param = 1.0 + 0.1 * jax.random.uniform(kl, (D, C), dtype=jnp.float32)

    out = membership_activation(x, c_param, lam_param)
    out = jax.block_until_ready(out)

    ref = membership_ref(x, c_param, lam_param)
    assert out.shape == (N, C, WH)
    assert jnp.allclose(out, ref, rtol=1e-5, atol=1e-6), "mismatch vs reference"

    print("KERNEL_OK")
</pallas_src>

<mosaic_0001>
module attributes {stable_mosaic.version = 11 : i64} {
  func.func @membership_kernel(%arg0: i32, %arg1: i32, %arg2: memref<2x4x128xf32, #tpu.memory_space<vmem>>, %arg3: memref<4x8x1xf32, #tpu.memory_space<vmem>>, %arg4: memref<4x8x1xf32, #tpu.memory_space<vmem>>, %arg5: memref<4x8x1xf32, #tpu.memory_space<vmem>>, %arg6: memref<4x8x1xf32, #tpu.memory_space<vmem>>, %arg7: memref<2x8x128xf32, #tpu.memory_space<vmem>>) attributes {dimension_semantics = [#tpu.dimension_semantics<parallel>, #tpu.dimension_semantics<parallel>], iteration_bounds = array<i64: 1, 1>, scalar_prefetch = 0 : i64, scratch_operands = 0 : i64, tpu.core_type = #tpu.core_type<tc>, window_params = [{transform_indices = @transform_0, window_bounds = array<i64: 2, 4, 128>}, {pipeline_mode = #tpu.pipeline_mode<synchronous>, transform_indices = @transform_1, window_bounds = array<i64: 4, 8, 1>}, {pipeline_mode = #tpu.pipeline_mode<synchronous>, transform_indices = @transform_2, window_bounds = array<i64: 4, 8, 1>}, {pipeline_mode = #tpu.pipeline_mode<synchronous>, transform_indices = @transform_3, window_bounds = array<i64: 4, 8, 1>}, {pipeline_mode = #tpu.pipeline_mode<synchronous>, transform_indices = @transform_4, window_bounds = array<i64: 4, 8, 1>}, {transform_indices = @transform_5, window_bounds = array<i64: 2, 8, 128>}]} {
    %c0 = arith.constant 0 : index
    %c0_0 = arith.constant 0 : index
    %c0_1 = arith.constant 0 : index
    %0 = vector.load %arg2[%c0, %c0_0, %c0_1] : memref<2x4x128xf32, #tpu.memory_space<vmem>>, vector<1x1x128xf32>
    %1 = vector.shape_cast %0 : vector<1x1x128xf32> to vector<1x128xf32>
    %c0_2 = arith.constant 0 : index
    %c0_3 = arith.constant 0 : index
    %c0_4 = arith.constant 0 : index
    %2 = vector.load %arg3[%c0_2, %c0_3, %c0_4] : memref<4x8x1xf32, #tpu.memory_space<vmem>>, vector<1x8x1xf32>
    %3 = vector.shape_cast %2 : vector<1x8x1xf32> to vector<8x1xf32>
    %c0_5 = arith.constant 0 : index
    %c0_6 = arith.constant 0 : index
    %c0_7 = arith.constant 0 : index
    %4 = vector.load %arg4[%c0_5, %c0_6, %c0_7] : memref<4x8x1xf32, #tpu.memory_space<vmem>>, vector<1x8x1xf32>
    %5 = vector.shape_cast %4 : vector<1x8x1xf32> to vector<8x1xf32>
    %c0_8 = arith.constant 0 : index
    %c0_9 = arith.constant 0 : index
    %c0_10 = arith.constant 0 : index
    %6 = vector.load %arg5[%c0_8, %c0_9, %c0_10] : memref<4x8x1xf32, #tpu.memory_space<vmem>>, vector<1x8x1xf32>
    %7 = vector.shape_cast %6 : vector<1x8x1xf32> to vector<8x1xf32>
    %c0_11 = arith.constant 0 : index
    %c0_12 = arith.constant 0 : index
    %c0_13 = arith.constant 0 : index
    %8 = vector.load %arg6[%c0_11, %c0_12, %c0_13] : memref<4x8x1xf32, #tpu.memory_space<vmem>>, vector<1x8x1xf32>
    %9 = vector.shape_cast %8 : vector<1x8x1xf32> to vector<8x1xf32>
    %10 = vector.broadcast %1 : vector<1x128xf32> to vector<8x128xf32>
    %11 = vector.broadcast %3 : vector<8x1xf32> to vector<8x128xf32>
    %12 = arith.subf %10, %11 : vector<8x128xf32>
    %13 = math.absf %12 : vector<8x128xf32>
    %14 = vector.broadcast %9 : vector<8x1xf32> to vector<8x128xf32>
    %15 = arith.mulf %13, %14 : vector<8x128xf32>
    %cst = arith.constant 1.000000e+00 : f32
    %16 = vector.broadcast %cst : f32 to vector<8x128xf32>
    %17 = arith.subf %16, %15 : vector<8x128xf32>
    %cst_14 = arith.constant 2.000000e+00 : f32
    %18 = vector.broadcast %cst_14 : f32 to vector<8x128xf32>
    %19 = arith.mulf %18, %17 : vector<8x128xf32>
    %20 = arith.mulf %19, %17 : vector<8x128xf32>
    %cst_15 = arith.constant 2.000000e+00 : f32
    %21 = vector.broadcast %cst_15 : f32 to vector<8x128xf32>
    %22 = arith.mulf %21, %15 : vector<8x128xf32>
    %23 = arith.mulf %22, %15 : vector<8x128xf32>
    %cst_16 = arith.constant 1.000000e+00 : f32
    %24 = vector.broadcast %cst_16 : f32 to vector<8x128xf32>
    %25 = arith.subf %24, %23 : vector<8x128xf32>
    %26 = vector.broadcast %7 : vector<8x1xf32> to vector<8x128xf32>
    %27 = arith.cmpf olt, %13, %26 : vector<8x128xf32>
    %28 = vector.broadcast %5 : vector<8x1xf32> to vector<8x128xf32>
    %29 = arith.cmpf olt, %13, %28 : vector<8x128xf32>
    %cst_17 = arith.constant 0.000000e+00 : f32
    %30 = vector.broadcast %cst_17 : f32 to vector<8x128xf32>
    %31 = arith.select %29, %20, %30 : vector<8x128xi1>, vector<8x128xf32>
    %32 = arith.select %27, %25, %31 : vector<8x128xi1>, vector<8x128xf32>
    %cst_18 = arith.constant 9.99999997E-7 : f32
    %33 = vector.broadcast %cst_18 : f32 to vector<8x128xf32>
    %34 = arith.maximumf %32, %33 : vector<8x128xf32>
    %cst_19 = arith.constant 9.99999997E-7 : f32
    %35 = vector.broadcast %cst_19 : f32 to vector<8x128xf32>
    %36 = arith.subf %34, %35 : vector<8x128xf32>
    %c0_20 = arith.constant 0 : index
    %c1 = arith.constant 1 : index
    %c0_21 = arith.constant 0 : index
    %37 = vector.load %arg2[%c0_20, %c1, %c0_21] : memref<2x4x128xf32, #tpu.memory_space<vmem>>, vector<1x1x128xf32>
    %38 = vector.shape_cast %37 : vector<1x1x128xf32> to vector<1x128xf32>
    %c1_22 = arith.constant 1 : index
    %c0_23 = arith.constant 0 : index
    %c0_24 = arith.constant 0 : index
    %39 = vector.load %arg3[%c1_22, %c0_23, %c0_24] : memref<4x8x1xf32, #tpu.memory_space<vmem>>, vector<1x8x1xf32>
    %40 = vector.shape_cast %39 : vector<1x8x1xf32> to vector<8x1xf32>
    %c1_25 = arith.constant 1 : index
    %c0_26 = arith.constant 0 : index
    %c0_27 = arith.constant 0 : index
    %41 = vector.load %arg4[%c1_25, %c0_26, %c0_27] : memref<4x8x1xf32, #tpu.memory_space<vmem>>, vector<1x8x1xf32>
    %42 = vector.shape_cast %41 : vector<1x8x1xf32> to vector<8x1xf32>
    %c1_28 = arith.constant 1 : index
    %c0_29 = arith.constant 0 : index
    %c0_30 = arith.constant 0 : index
    %43 = vector.load %arg5[%c1_28, %c0_29, %c0_30] : memref<4x8x1xf32, #tpu.memory_space<vmem>>, vector<1x8x1xf32>
    %44 = vector.shape_cast %43 : vector<1x8x1xf32> to vector<8x1xf32>
    %c1_31 = arith.constant 1 : index
    %c0_32 = arith.constant 0 : index
    %c0_33 = arith.constant 0 : index
    %45 = vector.load %arg6[%c1_31, %c0_32, %c0_33] : memref<4x8x1xf32, #tpu.memory_space<vmem>>, vector<1x8x1xf32>
    %46 = vector.shape_cast %45 : vector<1x8x1xf32> to vector<8x1xf32>
    %47 = vector.broadcast %38 : vector<1x128xf32> to vector<8x128xf32>
    %48 = vector.broadcast %40 : vector<8x1xf32> to vector<8x128xf32>
    %49 = arith.subf %47, %48 : vector<8x128xf32>
    %50 = math.absf %49 : vector<8x128xf32>
    %51 = vector.broadcast %46 : vector<8x1xf32> to vector<8x128xf32>
    %52 = arith.mulf %50, %51 : vector<8x128xf32>
    %cst_34 = arith.constant 1.000000e+00 : f32
    %53 = vector.broadcast %cst_34 : f32 to vector<8x128xf32>
    %54 = arith.subf %53, %52 : vector<8x128xf32>
    %cst_35 = arith.constant 2.000000e+00 : f32
    %55 = vector.broadcast %cst_35 : f32 to vector<8x128xf32>
    %56 = arith.mulf %55, %54 : vector<8x128xf32>
    %57 = arith.mulf %56, %54 : vector<8x128xf32>
    %cst_36 = arith.constant 2.000000e+00 : f32
    %58 = vector.broadcast %cst_36 : f32 to vector<8x128xf32>
    %59 = arith.mulf %58, %52 : vector<8x128xf32>
    %60 = arith.mulf %59, %52 : vector<8x128xf32>
    %cst_37 = arith.constant 1.000000e+00 : f32
    %61 = vector.broadcast %cst_37 : f32 to vector<8x128xf32>
    %62 = arith.subf %61, %60 : vector<8x128xf32>
    %63 = vector.broadcast %44 : vector<8x1xf32> to vector<8x128xf32>
    %64 = arith.cmpf olt, %50, %63 : vector<8x128xf32>
    %65 = vector.broadcast %42 : vector<8x1xf32> to vector<8x128xf32>
    %66 = arith.cmpf olt, %50, %65 : vector<8x128xf32>
    %cst_38 = arith.constant 0.000000e+00 : f32
    %67 = vector.broadcast %cst_38 : f32 to vector<8x128xf32>
    %68 = arith.select %66, %57, %67 : vector<8x128xi1>, vector<8x128xf32>
    %69 = arith.select %64, %62, %68 : vector<8x128xi1>, vector<8x128xf32>
    %cst_39 = arith.constant 9.99999997E-7 : f32
    %70 = vector.broadcast %cst_39 : f32 to vector<8x128xf32>
    %71 = arith.maximumf %69, %70 : vector<8x128xf32>
    %cst_40 = arith.constant 9.99999997E-7 : f32
    %72 = vector.broadcast %cst_40 : f32 to vector<8x128xf32>
    %73 = arith.subf %71, %72 : vector<8x128xf32>
    %74 = arith.mulf %36, %73 : vector<8x128xf32>
    %c0_41 = arith.constant 0 : index
    %c2 = arith.constant 2 : index
    %c0_42 = arith.constant 0 : index
    %75 = vector.load %arg2[%c0_41, %c2, %c0_42] : memref<2x4x128xf32, #tpu.memory_space<vmem>>, vector<1x1x128xf32>
    %76 = vector.shape_cast %75 : vector<1x1x128xf32> to vector<1x128xf32>
    %c2_43 = arith.constant 2 : index
    %c0_44 = arith.constant 0 : index
    %c0_45 = arith.constant 0 : index
    %77 = vector.load %arg3[%c2_43, %c0_44, %c0_45] : memref<4x8x1xf32, #tpu.memory_space<vmem>>, vector<1x8x1xf32>
    %78 = vector.shape_cast %77 : vector<1x8x1xf32> to vector<8x1xf32>
    %c2_46 = arith.constant 2 : index
    %c0_47 = arith.constant 0 : index
    %c0_48 = arith.constant 0 : index
    %79 = vector.load %arg4[%c2_46, %c0_47, %c0_48] : memref<4x8x1xf32, #tpu.memory_space<vmem>>, vector<1x8x1xf32>
    %80 = vector.shape_cast %79 : vector<1x8x1xf32> to vector<8x1xf32>
    %c2_49 = arith.constant 2 : index
    %c0_50 = arith.constant 0 : index
    %c0_51 = arith.constant 0 : index
    %81 = vector.load %arg5[%c2_49, %c0_50, %c0_51] : memref<4x8x1xf32, #tpu.memory_space<vmem>>, vector<1x8x1xf32>
    %82 = vector.shape_cast %81 : vector<1x8x1xf32> to vector<8x1xf32>
    %c2_52 = arith.constant 2 : index
    %c0_53 = arith.constant 0 : index
    %c0_54 = arith.constant 0 : index
    %83 = vector.load %arg6[%c2_52, %c0_53, %c0_54] : memref<4x8x1xf32, #tpu.memory_space<vmem>>, vector<1x8x1xf32>
    %84 = vector.shape_cast %83 : vector<1x8x1xf32> to vector<8x1xf32>
    %85 = vector.broadcast %76 : vector<1x128xf32> to vector<8x128xf32>
    %86 = vector.broadcast %78 : vector<8x1xf32> to vector<8x128xf32>
    %87 = arith.subf %85, %86 : vector<8x128xf32>
    %88 = math.absf %87 : vector<8x128xf32>
    %89 = vector.broadcast %84 : vector<8x1xf32> to vector<8x128xf32>
    %90 = arith.mulf %88, %89 : vector<8x128xf32>
    %cst_55 = arith.constant 1.000000e+00 : f32
    %91 = vector.broadcast %cst_55 : f32 to vector<8x128xf32>
    %92 = arith.subf %91, %90 : vector<8x128xf32>
    %cst_56 = arith.constant 2.000000e+00 : f32
    %93 = vector.broadcast %cst_56 : f32 to vector<8x128xf32>
    %94 = arith.mulf %93, %92 : vector<8x128xf32>
    %95 = arith.mulf %94, %92 : vector<8x128xf32>
    %cst_57 = arith.constant 2.000000e+00 : f32
    %96 = vector.broadcast %cst_57 : f32 to vector<8x128xf32>
    %97 = arith.mulf %96, %90 : vector<8x128xf32>
    %98 = arith.mulf %97, %90 : vector<8x128xf32>
    %cst_58 = arith.constant 1.000000e+00 : f32
    %99 = vector.broadcast %cst_58 : f32 to vector<8x128xf32>
    %100 = arith.subf %99, %98 : vector<8x128xf32>
    %101 = vector.broadcast %82 : vector<8x1xf32> to vector<8x128xf32>
    %102 = arith.cmpf olt, %88, %101 : vector<8x128xf32>
    %103 = vector.broadcast %80 : vector<8x1xf32> to vector<8x128xf32>
    %104 = arith.cmpf olt, %88, %103 : vector<8x128xf32>
    %cst_59 = arith.constant 0.000000e+00 : f32
    %105 = vector.broadcast %cst_59 : f32 to vector<8x128xf32>
    %106 = arith.select %104, %95, %105 : vector<8x128xi1>, vector<8x128xf32>
    %107 = arith.select %102, %100, %106 : vector<8x128xi1>, vector<8x128xf32>
    %cst_60 = arith.constant 9.99999997E-7 : f32
    %108 = vector.broadcast %cst_60 : f32 to vector<8x128xf32>
    %109 = arith.maximumf %107, %108 : vector<8x128xf32>
    %cst_61 = arith.constant 9.99999997E-7 : f32
    %110 = vector.broadcast %cst_61 : f32 to vector<8x128xf32>
    %111 = arith.subf %109, %110 : vector<8x128xf32>
    %112 = arith.mulf %74, %111 : vector<8x128xf32>
    %c0_62 = arith.constant 0 : index
    %c3 = arith.constant 3 : index
    %c0_63 = arith.constant 0 : index
    %113 = vector.load %arg2[%c0_62, %c3, %c0_63] : memref<2x4x128xf32, #tpu.memory_space<vmem>>, vector<1x1x128xf32>
    %114 = vector.shape_cast %113 : vector<1x1x128xf32> to vector<1x128xf32>
    %c3_64 = arith.constant 3 : index
    %c0_65 = arith.constant 0 : index
    %c0_66 = arith.constant 0 : index
    %115 = vector.load %arg3[%c3_64, %c0_65, %c0_66] : memref<4x8x1xf32, #tpu.memory_space<vmem>>, vector<1x8x1xf32>
    %116 = vector.shape_cast %115 : vector<1x8x1xf32> to vector<8x1xf32>
    %c3_67 = arith.constant 3 : index
    %c0_68 = arith.constant 0 : index
    %c0_69 = arith.constant 0 : index
    %117 = vector.load %arg4[%c3_67, %c0_68, %c0_69] : memref<4x8x1xf32, #tpu.memory_space<vmem>>, vector<1x8x1xf32>
    %118 = vector.shape_cast %117 : vector<1x8x1xf32> to vector<8x1xf32>
    %c3_70 = arith.constant 3 : index
    %c0_71 = arith.constant 0 : index
    %c0_72 = arith.constant 0 : index
    %119 = vector.load %arg5[%c3_70, %c0_71, %c0_72] : memref<4x8x1xf32, #tpu.memory_space<vmem>>, vector<1x8x1xf32>
    %120 = vector.shape_cast %119 : vector<1x8x1xf32> to vector<8x1xf32>
    %c3_73 = arith.constant 3 : index
    %c0_74 = arith.constant 0 : index
    %c0_75 = arith.constant 0 : index
    %121 = vector.load %arg6[%c3_73, %c0_74, %c0_75] : memref<4x8x1xf32, #tpu.memory_space<vmem>>, vector<1x8x1xf32>
    %122 = vector.shape_cast %121 : vector<1x8x1xf32> to vector<8x1xf32>
    %123 = vector.broadcast %114 : vector<1x128xf32> to vector<8x128xf32>
    %124 = vector.broadcast %116 : vector<8x1xf32> to vector<8x128xf32>
    %125 = arith.subf %123, %124 : vector<8x128xf32>
    %126 = math.absf %125 : vector<8x128xf32>
    %127 = vector.broadcast %122 : vector<8x1xf32> to vector<8x128xf32>
    %128 = arith.mulf %126, %127 : vector<8x128xf32>
    %cst_76 = arith.constant 1.000000e+00 : f32
    %129 = vector.broadcast %cst_76 : f32 to vector<8x128xf32>
    %130 = arith.subf %129, %128 : vector<8x128xf32>
    %cst_77 = arith.constant 2.000000e+00 : f32
    %131 = vector.broadcast %cst_77 : f32 to vector<8x128xf32>
    %132 = arith.mulf %131, %130 : vector<8x128xf32>
    %133 = arith.mulf %132, %130 : vector<8x128xf32>
    %cst_78 = arith.constant 2.000000e+00 : f32
    %134 = vector.broadcast %cst_78 : f32 to vector<8x128xf32>
    %135 = arith.mulf %134, %128 : vector<8x128xf32>
    %136 = arith.mulf %135, %128 : vector<8x128xf32>
    %cst_79 = arith.constant 1.000000e+00 : f32
    %137 = vector.broadcast %cst_79 : f32 to vector<8x128xf32>
    %138 = arith.subf %137, %136 : vector<8x128xf32>
    %139 = vector.broadcast %120 : vector<8x1xf32> to vector<8x128xf32>
    %140 = arith.cmpf olt, %126, %139 : vector<8x128xf32>
    %141 = vector.broadcast %118 : vector<8x1xf32> to vector<8x128xf32>
    %142 = arith.cmpf olt, %126, %141 : vector<8x128xf32>
    %cst_80 = arith.constant 0.000000e+00 : f32
    %143 = vector.broadcast %cst_80 : f32 to vector<8x128xf32>
    %144 = arith.select %142, %133, %143 : vector<8x128xi1>, vector<8x128xf32>
    %145 = arith.select %140, %138, %144 : vector<8x128xi1>, vector<8x128xf32>
    %cst_81 = arith.constant 9.99999997E-7 : f32
    %146 = vector.broadcast %cst_81 : f32 to vector<8x128xf32>
    %147 = arith.maximumf %145, %146 : vector<8x128xf32>
    %cst_82 = arith.constant 9.99999997E-7 : f32
    %148 = vector.broadcast %cst_82 : f32 to vector<8x128xf32>
    %149 = arith.subf %147, %148 : vector<8x128xf32>
    %150 = arith.mulf %112, %149 : vector<8x128xf32>
    %cst_83 = arith.constant 9.99999997E-7 : f32
    %151 = vector.broadcast %cst_83 : f32 to vector<8x128xf32>
    %152 = arith.maximumf %150, %151 : vector<8x128xf32>
    %c0_84 = arith.constant 0 : index
    %c0_85 = arith.constant 0 : index
    %c0_86 = arith.constant 0 : index
    %153 = vector.load %arg7[%c0_84, %c0_85, %c0_86] : memref<2x8x128xf32, #tpu.memory_space<vmem>>, vector<1x8x128xf32>
    %154 = vector.shape_cast %153 : vector<1x8x128xf32> to vector<8x128xf32>
    %155 = vector.shape_cast %152 : vector<8x128xf32> to vector<1x8x128xf32>
    tpu.vector_store %arg7[%c0_84, %c0_85, %c0_86], %155 {strides = array<i32>} : memref<2x8x128xf32, #tpu.memory_space<vmem>>, vector<1x8x128xf32>,
    %c1_87 = arith.constant 1 : index
    %c0_88 = arith.constant 0 : index
    %c0_89 = arith.constant 0 : index
    %156 = vector.load %arg2[%c1_87, %c0_88, %c0_89] : memref<2x4x128xf32, #tpu.memory_space<vmem>>, vector<1x1x128xf32>
    %157 = vector.shape_cast %156 : vector<1x1x128xf32> to vector<1x128xf32>
    %c0_90 = arith.constant 0 : index
    %c0_91 = arith.constant 0 : index
    %c0_92 = arith.constant 0 : index
    %158 = vector.load %arg3[%c0_90, %c0_91, %c0_92] : memref<4x8x1xf32, #tpu.memory_space<vmem>>, vector<1x8x1xf32>
    %159 = vector.shape_cast %158 : vector<1x8x1xf32> to vector<8x1xf32>
    %c0_93 = arith.constant 0 : index
    %c0_94 = arith.constant 0 : index
    %c0_95 = arith.constant 0 : index
    %160 = vector.load %arg4[%c0_93, %c0_94, %c0_95] : memref<4x8x1xf32, #tpu.memory_space<vmem>>, vector<1x8x1xf32>
    %161 = vector.shape_cast %160 : vector<1x8x1xf32> to vector<8x1xf32>
    %c0_96 = arith.constant 0 : index
    %c0_97 = arith.constant 0 : index
    %c0_98 = arith.constant 0 : index
    %162 = vector.load %arg5[%c0_96, %c0_97, %c0_98] : memref<4x8x1xf32, #tpu.memory_space<vmem>>, vector<1x8x1xf32>
    %163 = vector.shape_cast %162 : vector<1x8x1xf32> to vector<8x1xf32>
    %c0_99 = arith.constant 0 : index
    %c0_100 = arith.constant 0 : index
    %c0_101 = arith.constant 0 : index
    %164 = vector.load %arg6[%c0_99, %c0_100, %c0_101] : memref<4x8x1xf32, #tpu.memory_space<vmem>>, vector<1x8x1xf32>
    %165 = vector.shape_cast %164 : vector<1x8x1xf32> to vector<8x1xf32>
    %166 = vector.broadcast %157 : vector<1x128xf32> to vector<8x128xf32>
    %167 = vector.broadcast %159 : vector<8x1xf32> to vector<8x128xf32>
    %168 = arith.subf %166, %167 : vector<8x128xf32>
    %169 = math.absf %168 : vector<8x128xf32>
    %170 = vector.broadcast %165 : vector<8x1xf32> to vector<8x128xf32>
    %171 = arith.mulf %169, %170 : vector<8x128xf32>
    %cst_102 = arith.constant 1.000000e+00 : f32
    %172 = vector.broadcast %cst_102 : f32 to vector<8x128xf32>
    %173 = arith.subf %172, %171 : vector<8x128xf32>
    %cst_103 = arith.constant 2.000000e+00 : f32
    %174 = vector.broadcast %cst_103 : f32 to vector<8x128xf32>
    %175 = arith.mulf %174, %173 : vector<8x128xf32>
    %176 = arith.mulf %175, %173 : vector<8x128xf32>
    %cst_104 = arith.constant 2.000000e+00 : f32
    %177 = vector.broadcast %cst_104 : f32 to vector<8x128xf32>
    %178 = arith.mulf %177, %171 : vector<8x128xf32>
    %179 = arith.mulf %178, %171 : vector<8x128xf32>
    %cst_105 = arith.constant 1.000000e+00 : f32
    %180 = vector.broadcast %cst_105 : f32 to vector<8x128xf32>
    %181 = arith.subf %180, %179 : vector<8x128xf32>
    %182 = vector.broadcast %163 : vector<8x1xf32> to vector<8x128xf32>
    %183 = arith.cmpf olt, %169, %182 : vector<8x128xf32>
    %184 = vector.broadcast %161 : vector<8x1xf32> to vector<8x128xf32>
    %185 = arith.cmpf olt, %169, %184 : vector<8x128xf32>
    %cst_106 = arith.constant 0.000000e+00 : f32
    %186 = vector.broadcast %cst_106 : f32 to vector<8x128xf32>
    %187 = arith.select %185, %176, %186 : vector<8x128xi1>, vector<8x128xf32>
    %188 = arith.select %183, %181, %187 : vector<8x128xi1>, vector<8x128xf32>
    %cst_107 = arith.constant 9.99999997E-7 : f32
    %189 = vector.broadcast %cst_107 : f32 to vector<8x128xf32>
    %190 = arith.maximumf %188, %189 : vector<8x128xf32>
    %cst_108 = arith.constant 9.99999997E-7 : f32
    %191 = vector.broadcast %cst_108 : f32 to vector<8x128xf32>
    %192 = arith.subf %190, %191 : vector<8x128xf32>
    %c1_109 = arith.constant 1 : index
    %c1_110 = arith.constant 1 : index
    %c0_111 = arith.constant 0 : index
    %193 = vector.load %arg2[%c1_109, %c1_110, %c0_111] : memref<2x4x128xf32, #tpu.memory_space<vmem>>, vector<1x1x128xf32>
    %194 = vector.shape_cast %193 : vector<1x1x128xf32> to vector<1x128xf32>
    %c1_112 = arith.constant 1 : index
    %c0_113 = arith.constant 0 : index
    %c0_114 = arith.constant 0 : index
    %195 = vector.load %arg3[%c1_112, %c0_113, %c0_114] : memref<4x8x1xf32, #tpu.memory_space<vmem>>, vector<1x8x1xf32>
    %196 = vector.shape_cast %195 : vector<1x8x1xf32> to vector<8x1xf32>
    %c1_115 = arith.constant 1 : index
    %c0_116 = arith.constant 0 : index
    %c0_117 = arith.constant 0 : index
    %197 = vector.load %arg4[%c1_115, %c0_116, %c0_117] : memref<4x8x1xf32, #tpu.memory_space<vmem>>, vector<1x8x1xf32>
    %198 = vector.shape_cast %197 : vector<1x8x1xf32> to vector<8x1xf32>
    %c1_118 = arith.constant 1 : index
    %c0_119 = arith.constant 0 : index
    %c0_120 = arith.constant 0 : index
    %199 = vector.load %arg5[%c1_118, %c0_119, %c0_120] : memref<4x8x1xf32, #tpu.memory_space<vmem>>, vector<1x8x1xf32>
    %200 = vector.shape_cast %199 : vector<1x8x1xf32> to vector<8x1xf32>
    %c1_121 = arith.constant 1 : index
    %c0_122 = arith.constant 0 : index
    %c0_123 = arith.constant 0 : index
    %201 = vector.load %arg6[%c1_121, %c0_122, %c0_123] : memref<4x8x1xf32, #tpu.memory_space<vmem>>, vector<1x8x1xf32>
    %202 = vector.shape_cast %201 : vector<1x8x1xf32> to vector<8x1xf32>
    %203 = vector.broadcast %194 : vector<1x128xf32> to vector<8x128xf32>
    %204 = vector.broadcast %196 : vector<8x1xf32> to vector<8x128xf32>
    %205 = arith.subf %203, %204 : vector<8x128xf32>
    %206 = math.absf %205 : vector<8x128xf32>
    %207 = vector.broadcast %202 : vector<8x1xf32> to vector<8x128xf32>
    %208 = arith.mulf %206, %207 : vector<8x128xf32>
    %cst_124 = arith.constant 1.000000e+00 : f32
    %209 = vector.broadcast %cst_124 : f32 to vector<8x128xf32>
    %210 = arith.subf %209, %208 : vector<8x128xf32>
    %cst_125 = arith.constant 2.000000e+00 : f32
    %211 = vector.broadcast %cst_125 : f32 to vector<8x128xf32>
    %212 = arith.mulf %211, %210 : vector<8x128xf32>
    %213 = arith.mulf %212, %210 : vector<8x128xf32>
    %cst_126 = arith.constant 2.000000e+00 : f32
    %214 = vector.broadcast %cst_126 : f32 to vector<8x128xf32>
    %215 = arith.mulf %214, %208 : vector<8x128xf32>
    %216 = arith.mulf %215, %208 : vector<8x128xf32>
    %cst_127 = arith.constant 1.000000e+00 : f32
    %217 = vector.broadcast %cst_127 : f32 to vector<8x128xf32>
    %218 = arith.subf %217, %216 : vector<8x128xf32>
    %219 = vector.broadcast %200 : vector<8x1xf32> to vector<8x128xf32>
    %220 = arith.cmpf olt, %206, %219 : vector<8x128xf32>
    %221 = vector.broadcast %198 : vector<8x1xf32> to vector<8x128xf32>
    %222 = arith.cmpf olt, %206, %221 : vector<8x128xf32>
    %cst_128 = arith.constant 0.000000e+00 : f32
    %223 = vector.broadcast %cst_128 : f32 to vector<8x128xf32>
    %224 = arith.select %222, %213, %223 : vector<8x128xi1>, vector<8x128xf32>
    %225 = arith.select %220, %218, %224 : vector<8x128xi1>, vector<8x128xf32>
    %cst_129 = arith.constant 9.99999997E-7 : f32
    %226 = vector.broadcast %cst_129 : f32 to vector<8x128xf32>
    %227 = arith.maximumf %225, %226 : vector<8x128xf32>
    %cst_130 = arith.constant 9.99999997E-7 : f32
    %228 = vector.broadcast %cst_130 : f32 to vector<8x128xf32>
    %229 = arith.subf %227, %228 : vector<8x128xf32>
    %230 = arith.mulf %192, %229 : vector<8x128xf32>
    %c1_131 = arith.constant 1 : index
    %c2_132 = arith.constant 2 : index
    %c0_133 = arith.constant 0 : index
    %231 = vector.load %arg2[%c1_131, %c2_132, %c0_133] : memref<2x4x128xf32, #tpu.memory_space<vmem>>, vector<1x1x128xf32>
    %232 = vector.shape_cast %231 : vector<1x1x128xf32> to vector<1x128xf32>
    %c2_134 = arith.constant 2 : index
    %c0_135 = arith.constant 0 : index
    %c0_136 = arith.constant 0 : index
    %233 = vector.load %arg3[%c2_134, %c0_135, %c0_136] : memref<4x8x1xf32, #tpu.memory_space<vmem>>, vector<1x8x1xf32>
    %234 = vector.shape_cast %233 : vector<1x8x1xf32> to vector<8x1xf32>
    %c2_137 = arith.constant 2 : index
    %c0_138 = arith.constant 0 : index
    %c0_139 = arith.constant 0 : index
    %235 = vector.load %arg4[%c2_137, %c0_138, %c0_139] : memref<4x8x1xf32, #tpu.memory_space<vmem>>, vector<1x8x1xf32>
    %236 = vector.shape_cast %235 : vector<1x8x1xf32> to vector<8x1xf32>
    %c2_140 = arith.constant 2 : index
    %c0_141 = arith.constant 0 : index
    %c0_142 = arith.constant 0 : index
    %237 = vector.load %arg5[%c2_140, %c0_141, %c0_142] : memref<4x8x1xf32, #tpu.memory_space<vmem>>, vector<1x8x1xf32>
    %238 = vector.shape_cast %237 : vector<1x8x1xf32> to vector<8x1xf32>
    %c2_143 = arith.constant 2 : index
    %c0_144 = arith.constant 0 : index
    %c0_145 = arith.constant 0 : index
    %239 = vector.load %arg6[%c2_143, %c0_144, %c0_145] : memref<4x8x1xf32, #tpu.memory_space<vmem>>, vector<1x8x1xf32>
    %240 = vector.shape_cast %239 : vector<1x8x1xf32> to vector<8x1xf32>
    %241 = vector.broadcast %232 : vector<1x128xf32> to vector<8x128xf32>
    %242 = vector.broadcast %234 : vector<8x1xf32> to vector<8x128xf32>
    %243 = arith.subf %241, %242 : vector<8x128xf32>
    %244 = math.absf %243 : vector<8x128xf32>
    %245 = vector.broadcast %240 : vector<8x1xf32> to vector<8x128xf32>
    %246 = arith.mulf %244, %245 : vector<8x128xf32>
    %cst_146 = arith.constant 1.000000e+00 : f32
    %247 = vector.broadcast %cst_146 : f32 to vector<8x128xf32>
    %248 = arith.subf %247, %246 : vector<8x128xf32>
    %cst_147 = arith.constant 2.000000e+00 : f32
    %249 = vector.broadcast %cst_147 : f32 to vector<8x128xf32>
    %250 = arith.mulf %249, %248 : vector<8x128xf32>
    %251 = arith.mulf %250, %248 : vector<8x128xf32>
    %cst_148 = arith.constant 2.000000e+00 : f32
    %252 = vector.broadcast %cst_148 : f32 to vector<8x128xf32>
    %253 = arith.mulf %252, %246 : vector<8x128xf32>
    %254 = arith.mulf %253, %246 : vector<8x128xf32>
    %cst_149 = arith.constant 1.000000e+00 : f32
    %255 = vector.broadcast %cst_149 : f32 to vector<8x128xf32>
    %256 = arith.subf %255, %254 : vector<8x128xf32>
    %257 = vector.broadcast %238 : vector<8x1xf32> to vector<8x128xf32>
    %258 = arith.cmpf olt, %244, %257 : vector<8x128xf32>
    %259 = vector.broadcast %236 : vector<8x1xf32> to vector<8x128xf32>
    %260 = arith.cmpf olt, %244, %259 : vector<8x128xf32>
    %cst_150 = arith.constant 0.000000e+00 : f32
    %261 = vector.broadcast %cst_150 : f32 to vector<8x128xf32>
    %262 = arith.select %260, %251, %261 : vector<8x128xi1>, vector<8x128xf32>
    %263 = arith.select %258, %256, %262 : vector<8x128xi1>, vector<8x128xf32>
    %cst_151 = arith.constant 9.99999997E-7 : f32
    %264 = vector.broadcast %cst_151 : f32 to vector<8x128xf32>
    %265 = arith.maximumf %263, %264 : vector<8x128xf32>
    %cst_152 = arith.constant 9.99999997E-7 : f32
    %266 = vector.broadcast %cst_152 : f32 to vector<8x128xf32>
    %267 = arith.subf %265, %266 : vector<8x128xf32>
    %268 = arith.mulf %230, %267 : vector<8x128xf32>
    %c1_153 = arith.constant 1 : index
    %c3_154 = arith.constant 3 : index
    %c0_155 = arith.constant 0 : index
    %269 = vector.load %arg2[%c1_153, %c3_154, %c0_155] : memref<2x4x128xf32, #tpu.memory_space<vmem>>, vector<1x1x128xf32>
    %270 = vector.shape_cast %269 : vector<1x1x128xf32> to vector<1x128xf32>
    %c3_156 = arith.constant 3 : index
    %c0_157 = arith.constant 0 : index
    %c0_158 = arith.constant 0 : index
    %271 = vector.load %arg3[%c3_156, %c0_157, %c0_158] : memref<4x8x1xf32, #tpu.memory_space<vmem>>, vector<1x8x1xf32>
    %272 = vector.shape_cast %271 : vector<1x8x1xf32> to vector<8x1xf32>
    %c3_159 = arith.constant 3 : index
    %c0_160 = arith.constant 0 : index
    %c0_161 = arith.constant 0 : index
    %273 = vector.load %arg4[%c3_159, %c0_160, %c0_161] : memref<4x8x1xf32, #tpu.memory_space<vmem>>, vector<1x8x1xf32>
    %274 = vector.shape_cast %273 : vector<1x8x1xf32> to vector<8x1xf32>
    %c3_162 = arith.constant 3 : index
    %c0_163 = arith.constant 0 : index
    %c0_164 = arith.constant 0 : index
    %275 = vector.load %arg5[%c3_162, %c0_163, %c0_164] : memref<4x8x1xf32, #tpu.memory_space<vmem>>, vector<1x8x1xf32>
    %276 = vector.shape_cast %275 : vector<1x8x1xf32> to vector<8x1xf32>
    %c3_165 = arith.constant 3 : index
    %c0_166 = arith.constant 0 : index
    %c0_167 = arith.constant 0 : index
    %277 = vector.load %arg6[%c3_165, %c0_166, %c0_167] : memref<4x8x1xf32, #tpu.memory_space<vmem>>, vector<1x8x1xf32>
    %278 = vector.shape_cast %277 : vector<1x8x1xf32> to vector<8x1xf32>
    %279 = vector.broadcast %270 : vector<1x128xf32> to vector<8x128xf32>
    %280 = vector.broadcast %272 : vector<8x1xf32> to vector<8x128xf32>
    %281 = arith.subf %279, %280 : vector<8x128xf32>
    %282 = math.absf %281 : vector<8x128xf32>
    %283 = vector.broadcast %278 : vector<8x1xf32> to vector<8x128xf32>
    %284 = arith.mulf %282, %283 : vector<8x128xf32>
    %cst_168 = arith.constant 1.000000e+00 : f32
    %285 = vector.broadcast %cst_168 : f32 to vector<8x128xf32>
    %286 = arith.subf %285, %284 : vector<8x128xf32>
    %cst_169 = arith.constant 2.000000e+00 : f32
    %287 = vector.broadcast %cst_169 : f32 to vector<8x128xf32>
    %288 = arith.mulf %287, %286 : vector<8x128xf32>
    %289 = arith.mulf %288, %286 : vector<8x128xf32>
    %cst_170 = arith.constant 2.000000e+00 : f32
    %290 = vector.broadcast %cst_170 : f32 to vector<8x128xf32>
    %291 = arith.mulf %290, %284 : vector<8x128xf32>
    %292 = arith.mulf %291, %284 : vector<8x128xf32>
    %cst_171 = arith.constant 1.000000e+00 : f32
    %293 = vector.broadcast %cst_171 : f32 to vector<8x128xf32>
    %294 = arith.subf %293, %292 : vector<8x128xf32>
    %295 = vector.broadcast %276 : vector<8x1xf32> to vector<8x128xf32>
    %296 = arith.cmpf olt, %282, %295 : vector<8x128xf32>
    %297 = vector.broadcast %274 : vector<8x1xf32> to vector<8x128xf32>
    %298 = arith.cmpf olt, %282, %297 : vector<8x128xf32>
    %cst_172 = arith.constant 0.000000e+00 : f32
    %299 = vector.broadcast %cst_172 : f32 to vector<8x128xf32>
    %300 = arith.select %298, %289, %299 : vector<8x128xi1>, vector<8x128xf32>
    %301 = arith.select %296, %294, %300 : vector<8x128xi1>, vector<8x128xf32>
    %cst_173 = arith.constant 9.99999997E-7 : f32
    %302 = vector.broadcast %cst_173 : f32 to vector<8x128xf32>
    %303 = arith.maximumf %301, %302 : vector<8x128xf32>
    %cst_174 = arith.constant 9.99999997E-7 : f32
    %304 = vector.broadcast %cst_174 : f32 to vector<8x128xf32>
    %305 = arith.subf %303, %304 : vector<8x128xf32>
    %306 = arith.mulf %268, %305 : vector<8x128xf32>
    %cst_175 = arith.constant 9.99999997E-7 : f32
    %307 = vector.broadcast %cst_175 : f32 to vector<8x128xf32>
    %308 = arith.maximumf %306, %307 : vector<8x128xf32>
    %c1_176 = arith.constant 1 : index
    %c0_177 = arith.constant 0 : index
    %c0_178 = arith.constant 0 : index
    %309 = vector.load %arg7[%c1_176, %c0_177, %c0_178] : memref<2x8x128xf32, #tpu.memory_space<vmem>>, vector<1x8x128xf32>
    %310 = vector.shape_cast %309 : vector<1x8x128xf32> to vector<8x128xf32>
    %311 = vector.shape_cast %308 : vector<8x128xf32> to vector<1x8x128xf32>
    tpu.vector_store %arg7[%c1_176, %c0_177, %c0_178], %311 {strides = array<i32>} : memref<2x8x128xf32, #tpu.memory_space<vmem>>, vector<1x8x128xf32>,
    return
  }
  func.func @transform_0(%arg0: i32, %arg1: i32) -> (i32, i32, i32) {
    %c0_i32 = arith.constant 0 : i32
    %c0_i32_0 = arith.constant 0 : i32
    return %arg0, %c0_i32, %arg1 : i32, i32, i32
  }
  func.func @transform_1(%arg0: i32, %arg1: i32) -> (i32, i32, i32) {
    %c0_i32 = arith.constant 0 : i32
    %c0_i32_0 = arith.constant 0 : i32
    %c0_i32_1 = arith.constant 0 : i32
    %c0_i32_2 = arith.constant 0 : i32
    return %c0_i32, %c0_i32_0, %c0_i32_1 : i32, i32, i32
  }
  func.func @transform_2(%arg0: i32, %arg1: i32) -> (i32, i32, i32) {
    %c0_i32 = arith.constant 0 : i32
    %c0_i32_0 = arith.constant 0 : i32
    %c0_i32_1 = arith.constant 0 : i32
    %c0_i32_2 = arith.constant 0 : i32
    return %c0_i32, %c0_i32_0, %c0_i32_1 : i32, i32, i32
  }
  func.func @transform_3(%arg0: i32, %arg1: i32) -> (i32, i32, i32) {
    %c0_i32 = arith.constant 0 : i32
    %c0_i32_0 = arith.constant 0 : i32
    %c0_i32_1 = arith.constant 0 : i32
    %c0_i32_2 = arith.constant 0 : i32
    return %c0_i32, %c0_i32_0, %c0_i32_1 : i32, i32, i32
  }
  func.func @transform_4(%arg0: i32, %arg1: i32) -> (i32, i32, i32) {
    %c0_i32 = arith.constant 0 : i32
    %c0_i32_0 = arith.constant 0 : i32
    %c0_i32_1 = arith.constant 0 : i32
    %c0_i32_2 = arith.constant 0 : i32
    return %c0_i32, %c0_i32_0, %c0_i32_1 : i32, i32, i32
  }
  func.func @transform_5(%arg0: i32, %arg1: i32) -> (i32, i32, i32) {
    %c0_i32 = arith.constant 0 : i32
    %c0_i32_0 = arith.constant 0 : i32
    return %arg0, %c0_i32, %arg1 : i32, i32, i32
  }
}

</mosaic_0001>

<llo_original>
// kernel: tpu_custom_call.1
$region0: #{tpu_custom_call.1}
  #allocation0 [shape = 'u32[]', space=smem, size = 0x4, offset = 0x4, fixed_abs, tag = 'smem constant byte address 0x4 - core index']
  #allocation1 [shape = 'u32[72,128]{1,0:T(1,128)}', space=vmem, size = 0x9000, scoped, tag = 'internal scratch']
  %s0 = inlined_call_operand.vmem [shape: f32[2,4,128], index: 0, kind: input, shape index: {}]
  %s1 = inlined_call_operand.vmem [shape: f32[4,8,1], index: 1, kind: input, shape index: {}]
  %s2 = inlined_call_operand.vmem [shape: f32[4,8,1], index: 2, kind: input, shape index: {}]
  %s3 = inlined_call_operand.vmem [shape: f32[4,8,1], index: 3, kind: input, shape index: {}]
  %s4 = inlined_call_operand.vmem [shape: f32[4,8,1], index: 4, kind: input, shape index: {}]
  %s5 = inlined_call_operand.hbm [shape: f32[2,8,128], index: 5, kind: output, shape index: {}]
  %s6 = sld [smem:[#allocation0]]
  $region30: #{tpu_custom_call.1} parent=0
    _
  %s8 = ssub.s32 1, %s6
  %s9 = scalar_select 0, %s8, %s6
  $region1: #{tpu_custom_call.1} parent=0
    #allocation2 [shape = 'u8[8192]{0}', space=vmem, size = 0x2000, scoped, tag = 'output window, operand 0, single buffered']
    #allocation3 [shape = 's32[1]{0}', space=sflag, size = 0x4, scoped, tag = 'scoped memory for tpu_custom_call.1']
    %10 = vsyncpa [#allocation3], 0
    // Predicated region
    $region2: #{tpu_custom_call.1} parent=1 // pred_check
      _
    $region3: #{tpu_custom_call.1} parent=1 // pred_check_branch
      %12 = sbr.rel (0) target = $region5
    $region4: #{tpu_custom_call.1} parent=1 // pred_region
      _
    $region5: #{tpu_custom_call.1} parent=1 // pred_fallthru
      _
    // Predicated region
    $region6: #{tpu_custom_call.1} parent=1 // pred_check
      _
    $region7: #{tpu_custom_call.1} parent=1 // pred_check_branch
      %14 = sbr.rel (0) target = $region9
    $region8: #{tpu_custom_call.1} parent=1 // pred_region
      _
    $region9: #{tpu_custom_call.1} parent=1 // pred_fallthru
      _
    // Predicated region
    $region10: #{tpu_custom_call.1} parent=1 // pred_check
      _
    $region11: #{tpu_custom_call.1} parent=1 // pred_check_branch
      %16 = sbr.rel (0) target = $region13
    $region12: #{tpu_custom_call.1} parent=1 // pred_region
      _
    $region13: #{tpu_custom_call.1} parent=1 // pred_fallthru
      _
    // Predicated region
    $region14: #{tpu_custom_call.1} parent=1 // pred_check
      _
    $region15: #{tpu_custom_call.1} parent=1 // pred_check_branch
      %18 = sbr.rel (0) target = $region17
    $region16: #{tpu_custom_call.1} parent=1 // pred_region
      _
    $region17: #{tpu_custom_call.1} parent=1 // pred_fallthru
      _
    // Predicated region
    $region18: #{tpu_custom_call.1} parent=1 // pred_check
      _
    $region19: #{tpu_custom_call.1} parent=1 // pred_check_branch
      %20 = sbr.rel (0) target = $region21
    $region20: #{tpu_custom_call.1} parent=1 // pred_region
      _
    $region21: #{tpu_custom_call.1} parent=1 // pred_fallthru
      _
    %v21 = vld [vmem:[%s0] sm:$0x1]
    %v22 = vld [vmem:[%s1] sm:$0xff]
    %v23 = vld [vmem:[%s2] sm:$0xff]
    %v24 = vld [vmem:[%s3] sm:$0xff]
    %v25 = vld [vmem:[%s4] sm:$0xff]
    %v26 = vperm.slane %v21, 0
    %28 = vset.pattern.permute.xlu0 0
    %29 = vperm.xlu0 %28, %v22
    %v30 = vpop.permute.xlu0 %29
    %v32 = vsub.f32 %v26, %v30
    %v33 = vand.u32 2147483647, %v32
    %35 = vset.pattern.permute.xlu0 0
    %36 = vperm.xlu0 %35, %v25
    %v37 = vpop.permute.xlu0 %36
    %v39 = vmul.f32 %v33, %v37
    %v40 = vsub.f32 1.0, %v39
    %v41 = vmul.f32 %v40, 2.0
    %v42 = vmul.f32 %v41, %v40
    %v43 = vmul.f32 %v39, 2.0
    %v44 = vmul.f32 %v43, %v39
    %v45 = vsub.f32 1.0, %v44
    %47 = vset.pattern.permute.xlu0 0
    %48 = vperm.xlu0 %47, %v24
    %v49 = vpop.permute.xlu0 %48
    %vm51 = vcmp.lt.f32.partialorder %v33, %v49
    %53 = vset.pattern.permute.xlu0 0
    %54 = vperm.xlu0 %53, %v23
    %v55 = vpop.permute.xlu0 %54
    %vm57 = vcmp.lt.f32.partialorder %v33, %v55
    %v58 = vsel %vm57, %v42, 0.0
    %v59 = vsel %vm51, %v45, %v58
    %v60 = vmax.f32 %v59, 1e-06
    %v61 = vsub.f32 %v60, 1e-06
    %v62 = vld [vmem:[%s0 + $0x1] sm:$0x1]
    %s63 = scalar_lea.vmem %s1, 8
    %v64 = vld [vmem:[%s63] sm:$0xff]
    %s65 = scalar_lea.vmem %s2, 8
    %v66 = vld [vmem:[%s65] sm:$0xff]
    %s67 = scalar_lea.vmem %s3, 8
    %v68 = vld [vmem:[%s67] sm:$0xff]
    %s69 = scalar_lea.vmem %s4, 8
    %v70 = vld [vmem:[%s69] sm:$0xff]
    %v71 = vperm.slane %v62, 0
    %73 = vset.pattern.permute.xlu0 0
    %74 = vperm.xlu0 %73, %v64
    %v75 = vpop.permute.xlu0 %74
    %v77 = vsub.f32 %v71, %v75
    %v78 = vand.u32 2147483647, %v77
    %80 = vset.pattern.permute.xlu0 0
    %81 = vperm.xlu0 %80, %v70
    %v82 = vpop.permute.xlu0 %81
    %v84 = vmul.f32 %v78, %v82
    %v85 = vsub.f32 1.0, %v84
    %v86 = vmul.f32 %v85, 2.0
    %v87 = vmul.f32 %v86, %v85
    %v88 = vmul.f32 %v84, 2.0
    %v89 = vmul.f32 %v88, %v84
    %v90 = vsub.f32 1.0, %v89
    %92 = vset.pattern.permute.xlu0 0
    %93 = vperm.xlu0 %92, %v68
    %v94 = vpop.permute.xlu0 %93
    %vm96 = vcmp.lt.f32.partialorder %v78, %v94
    %98 = vset.pattern.permute.xlu0 0
    %99 = vperm.xlu0 %98, %v66
    %v100 = vpop.permute.xlu0 %99
    %vm102 = vcmp.lt.f32.partialorder %v78, %v100
    %v103 = vsel %vm102, %v87, 0.0
    %v104 = vsel %vm96, %v90, %v103
    %v105 = vmax.f32 %v104, 1e-06
    %v106 = vsub.f32 %v105, 1e-06
    %v107 = vmul.f32 %v61, %v106
    %v108 = vld [vmem:[%s0 + $0x2] sm:$0x1]
    %s109 = scalar_lea.vmem %s1, 16
    %v110 = vld [vmem:[%s109] sm:$0xff]
    %s111 = scalar_lea.vmem %s2, 16
    %v112 = vld [vmem:[%s111] sm:$0xff]
    %s113 = scalar_lea.vmem %s3, 16
    %v114 = vld [vmem:[%s113] sm:$0xff]
    %s115 = scalar_lea.vmem %s4, 16
    %v116 = vld [vmem:[%s115] sm:$0xff]
    %v117 = vperm.slane %v108, 0
    %119 = vset.pattern.permute.xlu0 0
    %120 = vperm.xlu0 %119, %v110
    %v121 = vpop.permute.xlu0 %120
    %v123 = vsub.f32 %v117, %v121
    %v124 = vand.u32 2147483647, %v123
    %126 = vset.pattern.permute.xlu0 0
    %127 = vperm.xlu0 %126, %v116
    %v128 = vpop.permute.xlu0 %127
    %v130 = vmul.f32 %v124, %v128
    %v131 = vsub.f32 1.0, %v130
    %v132 = vmul.f32 %v131, 2.0
    %v133 = vmul.f32 %v132, %v131
    %v134 = vmul.f32 %v130, 2.0
    %v135 = vmul.f32 %v134, %v130
    %v136 = vsub.f32 1.0, %v135
    %138 = vset.pattern.permute.xlu0 0
    %139 = vperm.xlu0 %138, %v114
    %v140 = vpop.permute.xlu0 %139
    %vm142 = vcmp.lt.f32.partialorder %v124, %v140
    %144 = vset.pattern.permute.xlu0 0
    %145 = vperm.xlu0 %144, %v112
    %v146 = vpop.permute.xlu0 %145
    %vm148 = vcmp.lt.f32.partialorder %v124, %v146
    %v149 = vsel %vm148, %v133, 0.0
    %v150 = vsel %vm142, %v136, %v149
    %v151 = vmax.f32 %v150, 1e-06
    %v152 = vsub.f32 %v151, 1e-06
    %v153 = vmul.f32 %v107, %v152
    %v154 = vld [vmem:[%s0 + $0x3] sm:$0x1]
    %s155 = scalar_lea.vmem %s1, 24
    %v156 = vld [vmem:[%s155] sm:$0xff]
    %s157 = scalar_lea.vmem %s2, 24
    %v158 = vld [vmem:[%s157] sm:$0xff]
    %s159 = scalar_lea.vmem %s3, 24
    %v160 = vld [vmem:[%s159] sm:$0xff]
    %s161 = scalar_lea.vmem %s4, 24
    %v162 = vld [vmem:[%s161] sm:$0xff]
    %v163 = vperm.slane %v154, 0
    %165 = vset.pattern.permute.xlu0 0
    %166 = vperm.xlu0 %165, %v156
    %v167 = vpop.permute.xlu0 %166
    %v169 = vsub.f32 %v163, %v167
    %v170 = vand.u32 2147483647, %v169
    %172 = vset.pattern.permute.xlu0 0
    %173 = vperm.xlu0 %172, %v162
    %v174 = vpop.permute.xlu0 %173
    %v176 = vmul.f32 %v170, %v174
    %v177 = vsub.f32 1.0, %v176
    %v178 = vmul.f32 %v177, 2.0
    %v179 = vmul.f32 %v178, %v177
    %v180 = vmul.f32 %v176, 2.0
    %v181 = vmul.f32 %v180, %v176
    %v182 = vsub.f32 1.0, %v181
    %184 = vset.pattern.permute.xlu0 0
    %185 = vperm.xlu0 %184, %v160
    %v186 = vpop.permute.xlu0 %185
    %vm188 = vcmp.lt.f32.partialorder %v170, %v186
    %190 = vset.pattern.permute.xlu0 0
    %191 = vperm.xlu0 %190, %v158
    %v192 = vpop.permute.xlu0 %191
    %vm194 = vcmp.lt.f32.partialorder %v170, %v192
    %v195 = vsel %vm194, %v179, 0.0
    %v196 = vsel %vm188, %v182, %v195
    %v197 = vmax.f32 %v196, 1e-06
    %v198 = vsub.f32 %v197, 1e-06
    %v199 = vmul.f32 %v153, %v198
    %v200 = vmax.f32 %v199, 1e-06
    %201 = vst [vmem:[#allocation2] sm:$0xff] %v200
    %s202 = scalar_lea.vmem %s0, 4
    %v203 = vld [vmem:[%s202] sm:$0x1]
    %v204 = vld [vmem:[%s1] sm:$0xff]
    %v205 = vld [vmem:[%s2] sm:$0xff]
    %v206 = vld [vmem:[%s3] sm:$0xff]
    %v207 = vld [vmem:[%s4] sm:$0xff]
    %v208 = vperm.slane %v203, 0
    %210 = vset.pattern.permute.xlu0 0
    %211 = vperm.xlu0 %210, %v204
    %v212 = vpop.permute.xlu0 %211
    %v214 = vsub.f32 %v208, %v212
    %v215 = vand.u32 2147483647, %v214
    %217 = vset.pattern.permute.xlu0 0
    %218 = vperm.xlu0 %217, %v207
    %v219 = vpop.permute.xlu0 %218
    %v221 = vmul.f32 %v215, %v219
    %v222 = vsub.f32 1.0, %v221
    %v223 = vmul.f32 %v222, 2.0
    %v224 = vmul.f32 %v223, %v222
    %v225 = vmul.f32 %v221, 2.0
    %v226 = vmul.f32 %v225, %v221
    %v227 = vsub.f32 1.0, %v226
    %229 = vset.pattern.permute.xlu0 0
    %230 = vperm.xlu0 %229, %v206
    %v231 = vpop.permute.xlu0 %230
    %vm233 = vcmp.lt.f32.partialorder %v215, %v231
    %235 = vset.pattern.permute.xlu0 0
    %236 = vperm.xlu0 %235, %v205
    %v237 = vpop.permute.xlu0 %236
    %vm239 = vcmp.lt.f32.partialorder %v215, %v237
    %v240 = vsel %vm239, %v224, 0.0
    %v241 = vsel %vm233, %v227, %v240
    %v242 = vmax.f32 %v241, 1e-06
    %v243 = vsub.f32 %v242, 1e-06
    %v244 = vld [vmem:[%s202 + $0x1] sm:$0x1]
    %v245 = vld [vmem:[%s63] sm:$0xff]
    %v246 = vld [vmem:[%s65] sm:$0xff]
    %v247 = vld [vmem:[%s67] sm:$0xff]
    %v248 = vld [vmem:[%s69] sm:$0xff]
    %v249 = vperm.slane %v244, 0
    %251 = vset.pattern.permute.xlu0 0
    %252 = vperm.xlu0 %251, %v245
    %v253 = vpop.permute.xlu0 %252
    %v255 = vsub.f32 %v249, %v253
    %v256 = vand.u32 2147483647, %v255
    %258 = vset.pattern.permute.xlu0 0
    %259 = vperm.xlu0 %258, %v248
    %v260 = vpop.permute.xlu0 %259
    %v262 = vmul.f32 %v256, %v260
    %v263 = vsub.f32 1.0, %v262
    %v264 = vmul.f32 %v263, 2.0
    %v265 = vmul.f32 %v264, %v263
    %v266 = vmul.f32 %v262, 2.0
    %v267 = vmul.f32 %v266, %v262
    %v268 = vsub.f32 1.0, %v267
    %270 = vset.pattern.permute.xlu0 0
    %271 = vperm.xlu0 %270, %v247
    %v272 = vpop.permute.xlu0 %271
    %vm274 = vcmp.lt.f32.partialorder %v256, %v272
    %276 = vset.pattern.permute.xlu0 0
    %277 = vperm.xlu0 %276, %v246
    %v278 = vpop.permute.xlu0 %277
    %vm280 = vcmp.lt.f32.partialorder %v256, %v278
    %v281 = vsel %vm280, %v265, 0.0
    %v282 = vsel %vm274, %v268, %v281
    %v283 = vmax.f32 %v282, 1e-06
    %v284 = vsub.f32 %v283, 1e-06
    %v285 = vmul.f32 %v243, %v284
    %v286 = vld [vmem:[%s202 + $0x2] sm:$0x1]
    %v287 = vld [vmem:[%s109] sm:$0xff]
    %v288 = vld [vmem:[%s111] sm:$0xff]
    %v289 = vld [vmem:[%s113] sm:$0xff]
    %v290 = vld [vmem:[%s115] sm:$0xff]
    %v291 = vperm.slane %v286, 0
    %293 = vset.pattern.permute.xlu0 0
    %294 = vperm.xlu0 %293, %v287
    %v295 = vpop.permute.xlu0 %294
    %v297 = vsub.f32 %v291, %v295
    %v298 = vand.u32 2147483647, %v297
    %300 = vset.pattern.permute.xlu0 0
    %301 = vperm.xlu0 %300, %v290
    %v302 = vpop.permute.xlu0 %301
    %v304 = vmul.f32 %v298, %v302
    %v305 = vsub.f32 1.0, %v304
    %v306 = vmul.f32 %v305, 2.0
    %v307 = vmul.f32 %v306, %v305
    %v308 = vmul.f32 %v304, 2.0
    %v309 = vmul.f32 %v308, %v304
    %v310 = vsub.f32 1.0, %v309
    %312 = vset.pattern.permute.xlu0 0
    %313 = vperm.xlu0 %312, %v289
    %v314 = vpop.permute.xlu0 %313
    %vm316 = vcmp.lt.f32.partialorder %v298, %v314
    %318 = vset.pattern.permute.xlu0 0
    %319 = vperm.xlu0 %318, %v288
    %v320 = vpop.permute.xlu0 %319
    %vm322 = vcmp.lt.f32.partialorder %v298, %v320
    %v323 = vsel %vm322, %v307, 0.0
    %v324 = vsel %vm316, %v310, %v323
    %v325 = vmax.f32 %v324, 1e-06
    %v326 = vsub.f32 %v325, 1e-06
    %v327 = vmul.f32 %v285, %v326
    %v328 = vld [vmem:[%s202 + $0x3] sm:$0x1]
    %v329 = vld [vmem:[%s155] sm:$0xff]
    %v330 = vld [vmem:[%s157] sm:$0xff]
    %v331 = vld [vmem:[%s159] sm:$0xff]
    %v332 = vld [vmem:[%s161] sm:$0xff]
    %v333 = vperm.slane %v328, 0
    %335 = vset.pattern.permute.xlu0 0
    %336 = vperm.xlu0 %335, %v329
    %v337 = vpop.permute.xlu0 %336
    %v339 = vsub.f32 %v333, %v337
    %v340 = vand.u32 2147483647, %v339
    %342 = vset.pattern.permute.xlu0 0
    %343 = vperm.xlu0 %342, %v332
    %v344 = vpop.permute.xlu0 %343
    %v346 = vmul.f32 %v340, %v344
    %v347 = vsub.f32 1.0, %v346
    %v348 = vmul.f32 %v347, 2.0
    %v349 = vmul.f32 %v348, %v347
    %v350 = vmul.f32 %v346, 2.0
    %v351 = vmul.f32 %v350, %v346
    %v352 = vsub.f32 1.0, %v351
    %354 = vset.pattern.permute.xlu0 0
    %355 = vperm.xlu0 %354, %v331
    %v356 = vpop.permute.xlu0 %355
    %vm358 = vcmp.lt.f32.partialorder %v340, %v356
    %360 = vset.pattern.permute.xlu0 0
    %361 = vperm.xlu0 %360, %v330
    %v362 = vpop.permute.xlu0 %361
    %vm364 = vcmp.lt.f32.partialorder %v340, %v362
    %v365 = vsel %vm364, %v349, 0.0
    %v366 = vsel %vm358, %v352, %v365
    %v367 = vmax.f32 %v366, 1e-06
    %v368 = vsub.f32 %v367, 1e-06
    %v369 = vmul.f32 %v327, %v368
    %v370 = vmax.f32 %v369, 1e-06
    %s371 = scalar_lea.vmem [#allocation2], 8
    %372 = vst [vmem:[%s371] sm:$0xff] %v370
    // Predicated region
    $region22: #{tpu_custom_call.1} parent=1 // pred_check
      _
    $region23: #{tpu_custom_call.1} parent=1 // pred_check_branch
      %374 = sbr.rel (0) target = $region25
    $region24: #{tpu_custom_call.1} parent=1 // pred_region
      %376 = vsyncadd [#allocation3], 0
      %s377 = sshll.u32 [#allocation2], 4
      %s378 = int_to_ptr.vmem [resolvable:$true] %s377
      %s379 = sshll.u32 %s5, 4
      %s380 = int_to_ptr.hbm [resolvable:$true] %s379
      %385 = dma.vmem_to_hbm [thread:$0]  %s378, 256, %s380, [#allocation3], 128, 128, 8
    $region25: #{tpu_custom_call.1} parent=1 // pred_fallthru
      _
    // Predicated region
    $region26: #{tpu_custom_call.1} parent=1 // pred_check
      _
    $region27: #{tpu_custom_call.1} parent=1 // pred_check_branch
      %387 = sbr.rel (0) target = $region29
    $region28: #{tpu_custom_call.1} parent=1 // pred_region
      %389 = dma.done [#allocation3], 256
    $region29: #{tpu_custom_call.1} parent=1 // pred_fallthru
      _
    %390 = vsyncpa [#allocation3], 1

</llo_original>
